<compile_context>
chip_gen: v7x
topology: tpu7x:2x2x1
jax: 0.10.0
libtpu: 0.0.40
codegen_flags: <defaults>
</compile_context>

<pallas_src>
import functools

import jax
import jax.numpy as jnp
from jax.experimental import pallas as pl
from jax.experimental.pallas import tpu as pltpu

DROPOUT_RATE = 0.1
_DROPOUT_BITS = 23  # keep-prob quantized to 2^-23 granularity (negligible for p=0.1)


def _apply_dropout(x, bits, threshold, keep_scale):
    # bits uniform in [0, 2^23); keep iff bits >= threshold  => P(keep) = 1 - p.
    keep = bits >= jnp.int32(threshold)
    return jnp.where(keep, x * jnp.float32(keep_scale), jnp.zeros_like(x))


def _layer1_kernel(a_ref, x_ref, bits_ref, o_ref, acc_ref, *,
                   threshold, keep_scale):
    """x1[i, :] = sum_k A[i, k] @ dropout(x0[k, :])."""
    k = pl.program_id(1)

    @pl.when(k == 0)
    def _():
        acc_ref[...] = jnp.zeros_like(acc_ref)

    xd = _apply_dropout(x_ref[...], bits_ref[...], threshold, keep_scale)
    acc_ref[...] += jnp.dot(a_ref[...], xd.astype(jnp.bfloat16),
                            preferred_element_type=jnp.float32)

    @pl.when(k == pl.num_programs(1) - 1)
    def _():
        o_ref[...] = acc_ref[...]


def _layer2_kernel(a_ref, x1k_ref, bits_ref, x0_ref, x1i_ref, o_ref, acc_ref, *,
                   threshold, keep_scale):
    """out[i, :] = (x0[i, :] + x1[i, :] + sum_k A[i, k] @ dropout(x1[k, :])) / 3."""
    k = pl.program_id(1)

    @pl.when(k == 0)
    def _():
        acc_ref[...] = jnp.zeros_like(acc_ref)

    xd = _apply_dropout(x1k_ref[...], bits_ref[...], threshold, keep_scale)
    acc_ref[...] += jnp.dot(a_ref[...], xd.astype(jnp.bfloat16),
                            preferred_element_type=jnp.float32)

    @pl.when(k == pl.num_programs(1) - 1)
    def _():
        o_ref[...] = (x0_ref[...] + x1i_ref[...] + acc_ref[...]) * (1.0 / 3.0)


def _pick_tile(n):
    # 256-aligned tiles for the v6e/v7x 256x256 bf16 MXU; 128 for small N (v5e
    # 128x128 MXU is also happy with either).
    for t in (256, 128):
        if n % t == 0:
            return t
    return n


def lightgcn2_forward(indices, a_hat, embed_weight, bits1, bits2,
                      dropout_rate=DROPOUT_RATE):
    # Embedding lookup (glue): (N,) int32 -> (N, E) f32.
    x0 = jnp.take(embed_weight, indices, axis=0).astype(jnp.float32)
    n, e = x0.shape
    assert a_hat.shape == (n, n)

    # bf16 A_hat: halves the dominant HBM read (A_hat is read once per layer)
    # and uses the MXU at full bf16 rate; accumulation stays f32.
    a_bf16 = a_hat.astype(jnp.bfloat16)

    tm = _pick_tile(n)
    tk = tm
    grid = (n // tm, n // tk)

    threshold = int(round(dropout_rate * (1 << _DROPOUT_BITS)))
    keep_scale = 1.0 / (1.0 - dropout_rate)

    cparams = pltpu.CompilerParams(
        dimension_semantics=("parallel", "arbitrary"),
        vmem_limit_bytes=32 * 1024 * 1024,
    )
    cost = pl.CostEstimate(
        flops=2 * n * n * e,
        transcendentals=0,
        bytes_accessed=n * n * 2 + 3 * n * e * 4,
    )

    # ---- layer 1: x1 = A_hat @ dropout(x0) --------------------------------
    x1 = pl.pallas_call(
        functools.partial(_layer1_kernel, threshold=threshold,
                          keep_scale=keep_scale),
        out_shape=jax.ShapeDtypeStruct((n, e), jnp.float32),
        grid=grid,
        in_specs=[
            pl.BlockSpec((tm, tk), lambda i, k: (i, k)),   # A_hat tile (bf16)
            pl.BlockSpec((tk, e), lambda i, k: (k, 0)),    # x0 K-tile
            pl.BlockSpec((tk, e), lambda i, k: (k, 0)),    # dropout bits K-tile
        ],
        out_specs=pl.BlockSpec((tm, e), lambda i, k: (i, 0)),
        scratch_shapes=[pltpu.VMEM((tm, e), jnp.float32)],
        compiler_params=cparams,
        cost_estimate=cost,
    )(a_bf16, x0, bits1)

    # ---- layer 2 + combine: out = (x0 + x1 + A_hat @ dropout(x1)) / 3 -----
    out = pl.pallas_call(
        functools.partial(_layer2_kernel, threshold=threshold,
                          keep_scale=keep_scale),
        out_shape=jax.ShapeDtypeStruct((n, e), jnp.float32),
        grid=grid,
        in_specs=[
            pl.BlockSpec((tm, tk), lambda i, k: (i, k)),   # A_hat tile (bf16)
            pl.BlockSpec((tk, e), lambda i, k: (k, 0)),    # x1 K-tile (matmul rhs)
            pl.BlockSpec((tk, e), lambda i, k: (k, 0)),    # dropout bits K-tile
            pl.BlockSpec((tm, e), lambda i, k: (i, 0)),    # x0 row tile (residual)
            pl.BlockSpec((tm, e), lambda i, k: (i, 0)),    # x1 row tile (residual)
        ],
        out_specs=pl.BlockSpec((tm, e), lambda i, k: (i, 0)),
        scratch_shapes=[pltpu.VMEM((tm, e), jnp.float32)],
        compiler_params=cparams,
        cost_estimate=cost,
    )(a_bf16, x1, bits2, x0, x1)

    return out


def _reference(indices, a_hat, embed_weight, bits1, bits2, dropout_rate):
    # Pure-JAX f32 reference using the same host-generated dropout bits.
    threshold = int(round(dropout_rate * (1 << _DROPOUT_BITS)))
    scale = 1.0 / (1.0 - dropout_rate)
    x0 = jnp.take(embed_weight, indices, axis=0)
    d1 = jnp.where(bits1 >= threshold, x0 * scale, 0.0)
    x1 = a_hat @ d1
    d2 = jnp.where(bits2 >= threshold, x1 * scale, 0.0)
    x2 = a_hat @ d2
    return (x0 + x1 + x2) / 3.0


if __name__ == "__main__":
    # Small but tiling-exercising shapes: 512 nodes -> 2x2 grid of 256 tiles.
    in_ch, emb_ch, n_nodes = 64, 128, 512

    key = jax.random.PRNGKey(0)
    k_emb, k_idx, k_adj, k_d1, k_d2 = jax.random.split(key, 5)

    # xavier_uniform_ init of the embedding table (in_ch, emb_ch).
    bound = (6.0 / (in_ch + emb_ch)) ** 0.5
    embed_weight = jax.random.uniform(
        k_emb, (in_ch, emb_ch), minval=-bound, maxval=bound, dtype=jnp.float32)

    # Node index input (N,) and symmetric normalized adjacency A_hat (N, N).
    indices = jax.random.randint(k_idx, (n_nodes,), 0, in_ch, dtype=jnp.int32)
    adj = (jax.random.uniform(k_adj, (n_nodes, n_nodes)) < 0.05).astype(jnp.float32)
    adj = jnp.maximum(adj, adj.T) + jnp.eye(n_nodes, dtype=jnp.float32)
    deg = jnp.sum(adj, axis=1, keepdims=True)
    d_inv_sqrt = 1.0 / jnp.sqrt(deg)
    a_hat = d_inv_sqrt * adj * d_inv_sqrt.T          # D^-1/2 A D^-1/2

    # Host-side dropout randomness: one uniform 23-bit integer per element.
    bits1 = jax.random.randint(
        k_d1, (n_nodes, emb_ch), 0, 1 << _DROPOUT_BITS, dtype=jnp.int32)
    bits2 = jax.random.randint(
        k_d2, (n_nodes, emb_ch), 0, 1 << _DROPOUT_BITS, dtype=jnp.int32)

    out = lightgcn2_forward(indices, a_hat, embed_weight, bits1, bits2)
    jax.block_until_ready(out)

    assert out.shape == (n_nodes, emb_ch) and out.dtype == jnp.float32

    ref = _reference(indices, a_hat, embed_weight, bits1, bits2, DROPOUT_RATE)
    max_err = float(jnp.max(jnp.abs(out - ref)))
    assert max_err < 5e-2, f"max abs error too large: {max_err}"

    print("KERNEL_OK")
</pallas_src>

<mosaic_0001>
module attributes {stable_mosaic.version = 11 : i64} {
  func.func @_layer1_kernel(%arg0: i32, %arg1: i32, %arg2: memref<256x256xbf16, #tpu.memory_space<vmem>>, %arg3: memref<256x128xf32, #tpu.memory_space<vmem>>, %arg4: memref<256x128xi32, #tpu.memory_space<vmem>>, %arg5: memref<256x128xf32, #tpu.memory_space<vmem>>, %arg6: memref<256x128xf32, #tpu.memory_space<vmem>>) attributes {dimension_semantics = [#tpu.dimension_semantics<parallel>, #tpu.dimension_semantics<arbitrary>], iteration_bounds = array<i64: 2, 2>, scalar_prefetch = 0 : i64, scratch_operands = 1 : i64, tpu.core_type = #tpu.core_type<tc>, window_params = [{transform_indices = @transform_0, window_bounds = array<i64: 256, 256>}, {transform_indices = @transform_1, window_bounds = array<i64: 256, 128>}, {transform_indices = @transform_2, window_bounds = array<i64: 256, 128>}, {transform_indices = @transform_3, window_bounds = array<i64: 256, 128>}]} {
    %c0_i32 = arith.constant 0 : i32
    %0 = arith.cmpi eq, %arg1, %c0_i32 : i32
    %1 = arith.extui %0 : i1 to i32
    %c0_i32_0 = arith.constant 0 : i32
    %2 = arith.cmpi ne, %1, %c0_i32_0 : i32
    scf.if %2 {
      %cst_13 = arith.constant 0.000000e+00 : f32
      %20 = vector.broadcast %cst_13 : f32 to vector<256x128xf32>
      %c0_14 = arith.constant 0 : index
      %c0_15 = arith.constant 0 : index
      %21 = vector.load %arg6[%c0_14, %c0_15] : memref<256x128xf32, #tpu.memory_space<vmem>>, vector<256x128xf32>
      tpu.vector_store %arg6[%c0_14, %c0_15], %20 {strides = array<i32>} : memref<256x128xf32, #tpu.memory_space<vmem>>, vector<256x128xf32>,
    } else {
    }
    %c0 = arith.constant 0 : index
    %c0_1 = arith.constant 0 : index
    %3 = vector.load %arg3[%c0, %c0_1] : memref<256x128xf32, #tpu.memory_space<vmem>>, vector<256x128xf32>
    %c0_2 = arith.constant 0 : index
    %c0_3 = arith.constant 0 : index
    %4 = vector.load %arg4[%c0_2, %c0_3] : memref<256x128xi32, #tpu.memory_space<vmem>>, vector<256x128xi32>
    %c838861_i32 = arith.constant 838861 : i32
    %5 = vector.broadcast %c838861_i32 : i32 to vector<256x128xi32>
    %6 = arith.cmpi sge, %4, %5 : vector<256x128xi32>
    %cst = arith.constant 1.11111116 : f32
    %7 = vector.broadcast %cst : f32 to vector<256x128xf32>
    %8 = arith.mulf %3, %7 : vector<256x128xf32>
    %cst_4 = arith.constant 0.000000e+00 : f32
    %9 = vector.broadcast %cst_4 : f32 to vector<256x128xf32>
    %10 = arith.select %6, %8, %9 : vector<256x128xi1>, vector<256x128xf32>
    %c0_5 = arith.constant 0 : index
    %c0_6 = arith.constant 0 : index
    %11 = vector.load %arg6[%c0_5, %c0_6] : memref<256x128xf32, #tpu.memory_space<vmem>>, vector<256x128xf32>
    %c0_7 = arith.constant 0 : index
    %c0_8 = arith.constant 0 : index
    %12 = vector.load %arg2[%c0_7, %c0_8] : memref<256x256xbf16, #tpu.memory_space<vmem>>, vector<256x256xbf16>
    %13 = arith.truncf %10 : vector<256x128xf32> to vector<256x128xbf16>
    %cst_9 = arith.constant dense<0.000000e+00> : vector<256x128xf32>
    %14 = tpu.matmul %12, %13, %cst_9 {dimension_numbers = #tpu.dot_dimension_numbers<[1], [0], [0], [1], [0, 0, 1, 1], [], []>} : vector<256x256xbf16>, vector<256x128xbf16>, vector<256x128xf32> -> vector<256x128xf32>
    %15 = arith.addf %11, %14 : vector<256x128xf32>
    %c0_10 = arith.constant 0 : index
    %c0_11 = arith.constant 0 : index
    %16 = vector.load %arg6[%c0_10, %c0_11] : memref<256x128xf32, #tpu.memory_space<vmem>>, vector<256x128xf32>
    tpu.vector_store %arg6[%c0_10, %c0_11], %15 {strides = array<i32>} : memref<256x128xf32, #tpu.memory_space<vmem>>, vector<256x128xf32>,
    %c1_i32 = arith.constant 1 : i32
    %17 = arith.cmpi eq, %arg1, %c1_i32 : i32
    %18 = arith.extui %17 : i1 to i32
    %c0_i32_12 = arith.constant 0 : i32
    %19 = arith.cmpi ne, %18, %c0_i32_12 : i32
    scf.if %19 {
      %c0_13 = arith.constant 0 : index
      %c0_14 = arith.constant 0 : index
      %20 = vector.load %arg6[%c0_13, %c0_14] : memref<256x128xf32, #tpu.memory_space<vmem>>, vector<256x128xf32>
      %c0_15 = arith.constant 0 : index
      %c0_16 = arith.constant 0 : index
      %21 = vector.load %arg5[%c0_15, %c0_16] : memref<256x128xf32, #tpu.memory_space<vmem>>, vector<256x128xf32>
      tpu.vector_store %arg5[%c0_15, %c0_16], %20 {strides = array<i32>} : memref<256x128xf32, #tpu.memory_space<vmem>>, vector<256x128xf32>,
    } else {
    }
    return
  }
  func.func @transform_0(%arg0: i32, %arg1: i32) -> (i32, i32) {
    %c0_i32 = arith.constant 0 : i32
    return %arg0, %arg1 : i32, i32
  }
  func.func @transform_1(%arg0: i32, %arg1: i32) -> (i32, i32) {
    %c0_i32 = arith.constant 0 : i32
    %c0_i32_0 = arith.constant 0 : i32
    return %arg1, %c0_i32 : i32, i32
  }
  func.func @transform_2(%arg0: i32, %arg1: i32) -> (i32, i32) {
    %c0_i32 = arith.constant 0 : i32
    %c0_i32_0 = arith.constant 0 : i32
    return %arg1, %c0_i32 : i32, i32
  }
  func.func @transform_3(%arg0: i32, %arg1: i32) -> (i32, i32) {
    %c0_i32 = arith.constant 0 : i32
    %c0_i32_0 = arith.constant 0 : i32
    return %arg0, %c0_i32 : i32, i32
  }
}

</mosaic_0001>

<llo_original>
// kernel: tpu_custom_call.1
$region0: #{tpu_custom_call.1}
  #allocation0 [shape = 'u32[]', space=smem, size = 0x4, offset = 0x4, fixed_abs, tag = 'smem constant byte address 0x4 - core index']
  #allocation1 [shape = 'u32[144,128]{1,0:T(1,128)}', space=vmem, size = 0x12000, scoped, tag = 'internal scratch']
  #allocation2 [shape = 'f32[256,128]{1,0:T(8,128)}', space=vmem, size = 0x20000, scoped, tag = 'scratch operand']
  %s0 = inlined_call_operand.hbm [shape: bf16[512,512], index: 0, kind: input, shape index: {}]
  %s1 = inlined_call_operand.hbm [shape: f32[512,128], index: 1, kind: input, shape index: {}]
  %s2 = inlined_call_operand.hbm [shape: s32[512,128], index: 2, kind: input, shape index: {}]
  %s3 = inlined_call_operand.hbm [shape: f32[512,128], index: 3, kind: output, shape index: {}]
  %s4 = sld [smem:[#allocation0]]
  $region65: #{tpu_custom_call.1} parent=0
    _
  %s6 = ssub.s32 1, %s4
  %s7 = scalar_select 0, %s6, %s4
  $region1: #{tpu_custom_call.1} parent=0
    #allocation3 [shape = 'u8[262144]{0}', space=vmem, size = 0x40000, scoped, tag = 'input window, operand 0']
    #allocation4 [shape = 's32[2]{0}', space=sflag, size = 0x8, scoped, tag = 'scoped memory for tpu_custom_call.1']
    #allocation5 [shape = 's32[2]{0}', space=sflag, size = 0x8, scoped, tag = 'scoped memory for tpu_custom_call.1']
    #allocation6 [shape = 'u8[262144]{0}', space=vmem, size = 0x40000, scoped, tag = 'input window, operand 1']
    #allocation7 [shape = 's32[2]{0}', space=sflag, size = 0x8, scoped, tag = 'scoped memory for tpu_custom_call.1']
    #allocation8 [shape = 'u8[262144]{0}', space=vmem, size = 0x40000, scoped, tag = 'input window, operand 2']
    #allocation9 [shape = 'u8[262144]{0}', space=vmem, size = 0x40000, scoped, tag = 'output window, operand 0']
    %8 = vsyncpa [#allocation4], 0
    %s9 = scalar_lea.sflag [#allocation4], 1
    %10 = vsyncpa %s9, 0
    %11 = vsyncpa [#allocation7], 0
    %s12 = scalar_lea.sflag [#allocation7], 1
    %13 = vsyncpa %s12, 0
    %14 = vsyncpa [#allocation5], 0
    %s15 = scalar_lea.sflag [#allocation5], 1
    %16 = vsyncpa %s15, 0
    loop: start=0, step=1, limit=6
    $region2: #{tpu_custom_call.1} parent=1 // loop_pre_header
      _
    $region3: #{tpu_custom_call.1} parent=1 // loop_header
      %s18 = sphi 0, %s22
      %p19 = scmp.ge.s32.totalorder %s18, 6
      %s25 = sphi 0, %s37
      %s26 = sphi 0, %s33
      %s27 = sphi 0, %s25
      %s28 = sphi 0, %s26
      %s29 = sphi 0, %s27
      %s30 = sphi 0, %s28
      %s42 = sphi 0, %s44
      %s45 = sphi 0, %s42
      %s46 = sphi 0, %s45
      %s62 = sphi 0, %s46
      %s68 = sphi 0, %s70
      %s71 = sphi 0, %s68
      %s72 = sphi 0, %s71
      %s88 = sphi 0, %s72
      %s94 = sphi 0, %s96
      %s97 = sphi 0, %s94
      %s98 = sphi 0, %s97
      %s114 = sphi 0, %s98
      %s120 = sphi 0, %s122
      %s123 = sphi 0, %s120
      %s124 = sphi 0, %s123
      %s140 = sphi 0, %s124
    $region4: #{tpu_custom_call.1} parent=1 // loop_header_branch
      %21 = sbr.rel (%p19) target = $region8
    $region5: #{tpu_custom_call.1} parent=1 // loop_body
      %s23 = ssub.s32 %s18, 1
      %s24 = ssub.s32 %s18, 2
      %s31 = sadd.s32 1, %s26
      %p32 = scmp.ge.s32.totalorder %s31, 2
      %s33 = scalar_select %p32, 0, %s31
      %s34 = sadd.s32 1, %s25
      %s35 = scalar_select %p32, %s34, %s25
      %p36 = scmp.ge.s32.totalorder %s35, 2
      %s37 = scalar_select %p36, 0, %s35
      %s38 = ssub.s32 %s25, %s37
      %s39 = ssub.s32 %s26, %s33
      %s40 = sor.u32 %s38, %s39
      %p41 = scmp.eq.s32.totalorder %s40, 0
      %s43 = sadd.s32 %s42, 1
      %s44 = scalar_select %p41, %s42, %s43
      %p47 = pneg %p41
      %p48 = scmp.eq.s32.totalorder %s18, 3
      %p49 = por %p47, %p48
      %p50 = scmp.ne.s32.totalorder %s42, %s45
      %p51 = scmp.eq.s32.totalorder %s18, 0
      %p52 = por %p50, %p51
      %p53 = scmp.ne.s32.totalorder %s42, %s45
      %p54 = scmp.eq.s32.totalorder %s23, 3
      %p55 = por %p53, %p54
      %p56 = scmp.ne.s32.totalorder %s45, %s46
      %p57 = scmp.eq.s32.totalorder %s23, 0
      %p58 = por %p56, %p57
      %p59 = scmp.ne.s32.totalorder %s45, %s46
      %p60 = scmp.eq.s32.totalorder %s24, 3
      %p61 = por %p59, %p60
      %p63 = scmp.ne.s32.totalorder %s46, %s62
      %p64 = scmp.eq.s32.totalorder %s24, 0
      %p65 = por %p63, %p64
      %s66 = ssub.s32 %s26, %s33
      %p67 = scmp.eq.s32.totalorder %s66, 0
      %s69 = sadd.s32 %s68, 1
      %s70 = scalar_select %p67, %s68, %s69
      %p73 = pneg %p67
      %p74 = scmp.eq.s32.totalorder %s18, 3
      %p75 = por %p73, %p74
      %p76 = scmp.ne.s32.totalorder %s68, %s71
      %p77 = scmp.eq.s32.totalorder %s18, 0
      %p78 = por %p76, %p77
      %p79 = scmp.ne.s32.totalorder %s68, %s71
      %p80 = scmp.eq.s32.totalorder %s23, 3
      %p81 = por %p79, %p80
      %p82 = scmp.ne.s32.totalorder %s71, %s72
      %p83 = scmp.eq.s32.totalorder %s23, 0
      %p84 = por %p82, %p83
      %p85 = scmp.ne.s32.totalorder %s71, %s72
      %p86 = scmp.eq.s32.totalorder %s24, 3
      %p87 = por %p85, %p86
      %p89 = scmp.ne.s32.totalorder %s72, %s88
      %p90 = scmp.eq.s32.totalorder %s24, 0
      %p91 = por %p89, %p90
      %s92 = ssub.s32 %s26, %s33
      %p93 = scmp.eq.s32.totalorder %s92, 0
      %s95 = sadd.s32 %s94, 1
      %s96 = scalar_select %p93, %s94, %s95
      %p99 = pneg %p93
      %p100 = scmp.eq.s32.totalorder %s18, 3
      %p101 = por %p99, %p100
      %p102 = scmp.ne.s32.totalorder %s94, %s97
      %p103 = scmp.eq.s32.totalorder %s18, 0
      %p104 = por %p102, %p103
      %p105 = scmp.ne.s32.totalorder %s94, %s97
      %p106 = scmp.eq.s32.totalorder %s23, 3
      %p107 = por %p105, %p106
      %p108 = scmp.ne.s32.totalorder %s97, %s98
      %p109 = scmp.eq.s32.totalorder %s23, 0
      %p110 = por %p108, %p109
      %p111 = scmp.ne.s32.totalorder %s97, %s98
      %p112 = scmp.eq.s32.totalorder %s24, 3
      %p113 = por %p111, %p112
      %p115 = scmp.ne.s32.totalorder %s98, %s114
      %p116 = scmp.eq.s32.totalorder %s24, 0
      %p117 = por %p115, %p116
      %s118 = ssub.s32 %s25, %s37
      %p119 = scmp.eq.s32.totalorder %s118, 0
      %s121 = sadd.s32 %s120, 1
      %s122 = scalar_select %p119, %s120, %s121
      %p125 = pneg %p119
      %p126 = scmp.eq.s32.totalorder %s18, 3
      %p127 = por %p125, %p126
      %p128 = scmp.ne.s32.totalorder %s120, %s123
      %p129 = scmp.eq.s32.totalorder %s18, 0
      %p130 = por %p128, %p129
      %p131 = scmp.ne.s32.totalorder %s120, %s123
      %p132 = scmp.eq.s32.totalorder %s23, 3
      %p133 = por %p131, %p132
      %p134 = scmp.ne.s32.totalorder %s123, %s124
      %p135 = scmp.eq.s32.totalorder %s23, 0
      %p136 = por %p134, %p135
      %p137 = scmp.ne.s32.totalorder %s123, %s124
      %p138 = scmp.eq.s32.totalorder %s24, 3
      %p139 = por %p137, %p138
      %p141 = scmp.ne.s32.totalorder %s124, %s140
      %p142 = scmp.eq.s32.totalorder %s24, 0
      %p143 = por %p141, %p142
      %p144 = scmp.le.s32.totalorder 1, %s18
      %p145 = scmp.lt.s32.totalorder %s18, 5
      %p146 = pnand %p144, %p145
      %p147 = pneg %p146
      // Predicated region
      $region9: #{tpu_custom_call.1} parent=5 // pred_check
        _
      $region10: #{tpu_custom_call.1} parent=5 // pred_check_branch
        %149 = sbr.rel (%p146) target = $region12
      $region11: #{tpu_custom_call.1} parent=5 // pred_region
        %s150 = ssub.s32 %s18, 1
      $region12: #{tpu_custom_call.1} parent=5 // pred_fallthru
        _
      %p151 = scmp.lt.s32.totalorder %s18, 4
      // Predicated region
      $region13: #{tpu_custom_call.1} parent=5 // pred_check
        %p152 = pneg %p151
      $region14: #{tpu_custom_call.1} parent=5 // pred_check_branch
        %154 = sbr.rel (%p152) target = $region16
      $region15: #{tpu_custom_call.1} parent=5 // pred_region
        // Predicated region
        $region17: #{tpu_custom_call.1} parent=15 // pred_check
          %p155 = pneg %p52
        $region18: #{tpu_custom_call.1} parent=15 // pred_check_branch
          %157 = sbr.rel (%p155) target = $region20
        $region19: #{tpu_custom_call.1} parent=15 // pred_region
          %s158 = sand.u32 %s42, 1
          %s159 = scalar_lea.sflag [#allocation4], %s158
          %s160 = sand.u32 %s42, 1
          %s161 = smul.addr %s160, 256
          %s162 = scalar_lea.vmem [#allocation3], %s161
          %s163 = smul.u32 32, %s25
          %s164 = smul.u32 2, %s26
          %s166 = ssub.s32 4096, 4096
          %167 = vsyncadd %s159, %s166
          %s168 = smul.addr %s163, 4
          %s169 = sadd.s32 %s164, %s168
          %s170 = smul.addr %s169, 64
          %s171 = scalar_lea.hbm %s0, %s170
          %s172 = sshll.u32 %s162, 4
          %s173 = int_to_ptr.vmem [resolvable:$true] %s172
          %178 = dma.hbm_to_vmem [thread:$0]  %s171, 4096, %s173, %s159, 256, 128, 8
        $region20: #{tpu_custom_call.1} parent=15 // pred_fallthru
          _
        // Predicated region
        $region21: #{tpu_custom_call.1} parent=15 // pred_check
          %p179 = pneg %p78
        $region22: #{tpu_custom_call.1} parent=15 // pred_check_branch
          %181 = sbr.rel (%p179) target = $region24
        $region23: #{tpu_custom_call.1} parent=15 // pred_region
          %s182 = sand.u32 %s18, 1
          %s183 = scalar_lea.sflag [#allocation7], %s182
          %s184 = sand.u32 %s68, 1
          %s185 = smul.addr %s184, 256
          %s186 = scalar_lea.vmem [#allocation6], %s185
          %s187 = smul.u32 32, %s26
          %s189 = ssub.s32 4096, 4096
          %190 = vsyncadd %s183, %s189
          %s191 = smul.addr %s187, 128
          %s192 = scalar_lea.hbm %s1, %s191
          %s193 = sshll.u32 %s186, 4
          %s194 = int_to_ptr.vmem [resolvable:$true] %s193
          %199 = dma.hbm_to_vmem [thread:$0]  %s192, 4096, %s194, %s183, 128, 128, 8
        $region24: #{tpu_custom_call.1} parent=15 // pred_fallthru
          _
        // Predicated region
        $region25: #{tpu_custom_call.1} parent=15 // pred_check
          %p200 = pneg %p104
        $region26: #{tpu_custom_call.1} parent=15 // pred_check_branch
          %202 = sbr.rel (%p200) target = $region28
        $region27: #{tpu_custom_call.1} parent=15 // pred_region
          %s203 = sand.u32 %s18, 1
          %s204 = scalar_lea.sflag [#allocation7], %s203
          %s205 = sand.u32 %s94, 1
          %s206 = smul.addr %s205, 256
          %s207 = scalar_lea.vmem [#allocation8], %s206
          %s208 = smul.u32 32, %s26
          %s210 = ssub.s32 4096, 4096
          %211 = vsyncadd %s204, %s210
          %s212 = smul.addr %s208, 128
          %s213 = scalar_lea.hbm %s2, %s212
          %s214 = sshll.u32 %s207, 4
          %s215 = int_to_ptr.vmem [resolvable:$true] %s214
          %220 = dma.hbm_to_vmem [thread:$0]  %s213, 4096, %s215, %s204, 128, 128, 8
        $region28: #{tpu_custom_call.1} parent=15 // pred_fallthru
          _
      $region16: #{tpu_custom_call.1} parent=5 // pred_fallthru
        _
      %p221 = scmp.le.s32.totalorder 1, %s18
      %p222 = scmp.lt.s32.totalorder %s18, 5
      %p223 = pnand %p221, %p222
      %p224 = pneg %p223
      // Predicated region
      $region29: #{tpu_custom_call.1} parent=5 // pred_check
        _
      $region30: #{tpu_custom_call.1} parent=5 // pred_check_branch
        %226 = sbr.rel (%p223) target = $region32
      $region31: #{tpu_custom_call.1} parent=5 // pred_region
        %s227 = ssub.s32 %s18, 1
        %s228 = sand.u32 %s45, 1
        %s229 = scalar_lea.sflag [#allocation4], %s228
        %s230 = sand.u32 %s45, 1
        %s231 = smul.addr %s230, 256
        %s232 = scalar_lea.vmem [#allocation3], %s231
        // Predicated region
        $region33: #{tpu_custom_call.1} parent=31 // pred_check
          %p233 = pneg %p58
        $region34: #{tpu_custom_call.1} parent=31 // pred_check_branch
          %235 = sbr.rel (%p233) target = $region36
        $region35: #{tpu_custom_call.1} parent=31 // pred_region
          %236 = dma.done %s229, 4096
        $region36: #{tpu_custom_call.1} parent=31 // pred_fallthru
          _
        %s237 = sand.u32 %s23, 1
        %s238 = scalar_lea.sflag [#allocation7], %s237
        %s239 = sand.u32 %s71, 1
        %s240 = smul.addr %s239, 256
        %s241 = scalar_lea.vmem [#allocation6], %s240
        // Predicated region
        $region37: #{tpu_custom_call.1} parent=31 // pred_check
          %p242 = pneg %p84
        $region38: #{tpu_custom_call.1} parent=31 // pred_check_branch
          %244 = sbr.rel (%p242) target = $region40
        $region39: #{tpu_custom_call.1} parent=31 // pred_region
          %245 = dma.done %s238, 4096
        $region40: #{tpu_custom_call.1} parent=31 // pred_fallthru
          _
        %s246 = sand.u32 %s23, 1
        %s247 = scalar_lea.sflag [#allocation7], %s246
        %s248 = sand.u32 %s97, 1
        %s249 = smul.addr %s248, 256
        %s250 = scalar_lea.vmem [#allocation8], %s249
        // Predicated region
        $region41: #{tpu_custom_call.1} parent=31 // pred_check
          %p251 = pneg %p110
        $region42: #{tpu_custom_call.1} parent=31 // pred_check_branch
          %253 = sbr.rel (%p251) target = $region44
        $region43: #{tpu_custom_call.1} parent=31 // pred_region
          %254 = dma.done %s247, 4096
        $region44: #{tpu_custom_call.1} parent=31 // pred_fallthru
          _
        %s255 = sand.u32 %s45, 1
        %s256 = scalar_lea.sflag [#allocation4], %s255
        %s257 = sand.u32 %s45, 1
        %s258 = smul.addr %s257, 256
        %s259 = scalar_lea.vmem [#allocation3], %s258
        %p260 = pneg %p58
        %p261 = pneg %p55
        %s262 = sand.u32 %s23, 1
        %s263 = scalar_lea.sflag [#allocation7], %s262
        %s264 = sand.u32 %s71, 1
        %s265 = smul.addr %s264, 256
        %s266 = scalar_lea.vmem [#allocation6], %s265
        %p267 = pneg %p84
        %p268 = pneg %p81
        %s269 = sand.u32 %s23, 1
        %s270 = scalar_lea.sflag [#allocation7], %s269
        %s271 = sand.u32 %s97, 1
        %s272 = smul.addr %s271, 256
        %s273 = scalar_lea.vmem [#allocation8], %s272
        %p274 = pneg %p110
        %p275 = pneg %p107
        %p276 = pneg %p136
        %p277 = pneg %p133
        %s278 = sand.u32 %s123, 1
        %s279 = scalar_lea.sflag [#allocation5], %s278
        %s280 = sand.u32 %s123, 1
        %s281 = smul.addr %s280, 256
        %s282 = scalar_lea.vmem [#allocation9], %s281
        %s283 = smul.u32 32, %s27
        %s284 = smul.u32 2, %s28
        %s285 = smul.u32 32, %s28
        %s286 = smul.u32 32, %s28
        %s287 = smul.u32 32, %s27
        %p289 = scmp.eq.s32.totalorder %s28, 0
        // Predicated region
        $region45: #{tpu_custom_call.1} parent=31 // pred_check
          %p290 = pneg %p289
        $region46: #{tpu_custom_call.1} parent=31 // pred_check_branch
          %292 = sbr.rel (%p290) target = $region48
        $region47: #{tpu_custom_call.1} parent=31 // pred_region
          %293 = vst [vmem:[#allocation2] sm:$0xff] 0.0
          %294 = vst [vmem:[#allocation2 + $0x8] sm:$0xff] 0.0
          %295 = vst [vmem:[#allocation2 + $0x10] sm:$0xff] 0.0
          %296 = vst [vmem:[#allocation2 + $0x18] sm:$0xff] 0.0
          %297 = vst [vmem:[#allocation2 + $0x20] sm:$0xff] 0.0
          %298 = vst [vmem:[#allocation2 + $0x28] sm:$0xff] 0.0
          %299 = vst [vmem:[#allocation2 + $0x30] sm:$0xff] 0.0
          %300 = vst [vmem:[#allocation2 + $0x38] sm:$0xff] 0.0
          %301 = vst [vmem:[#allocation2 + $0x40] sm:$0xff] 0.0
          %302 = vst [vmem:[#allocation2 + $0x48] sm:$0xff] 0.0
          %303 = vst [vmem:[#allocation2 + $0x50] sm:$0xff] 0.0
          %304 = vst [vmem:[#allocation2 + $0x58] sm:$0xff] 0.0
          %305 = vst [vmem:[#allocation2 + $0x60] sm:$0xff] 0.0
          %306 = vst [vmem:[#allocation2 + $0x68] sm:$0xff] 0.0
          %307 = vst [vmem:[#allocation2 + $0x70] sm:$0xff] 0.0
          %308 = vst [vmem:[#allocation2 + $0x78] sm:$0xff] 0.0
          %309 = vst [vmem:[#allocation2 + $0x80] sm:$0xff] 0.0
          %310 = vst [vmem:[#allocation2 + $0x88] sm:$0xff] 0.0
          %311 = vst [vmem:[#allocation2 + $0x90] sm:$0xff] 0.0
          %312 = vst [vmem:[#allocation2 + $0x98] sm:$0xff] 0.0
          %313 = vst [vmem:[#allocation2 + $0xa0] sm:$0xff] 0.0
          %314 = vst [vmem:[#allocation2 + $0xa8] sm:$0xff] 0.0
          %315 = vst [vmem:[#allocation2 + $0xb0] sm:$0xff] 0.0
          %316 = vst [vmem:[#allocation2 + $0xb8] sm:$0xff] 0.0
          %317 = vst [vmem:[#allocation2 + $0xc0] sm:$0xff] 0.0
          %318 = vst [vmem:[#allocation2 + $0xc8] sm:$0xff] 0.0
          %319 = vst [vmem:[#allocation2 + $0xd0] sm:$0xff] 0.0
          %320 = vst [vmem:[#allocation2 + $0xd8] sm:$0xff] 0.0
          %321 = vst [vmem:[#allocation2 + $0xe0] sm:$0xff] 0.0
          %322 = vst [vmem:[#allocation2 + $0xe8] sm:$0xff] 0.0
          %323 = vst [vmem:[#allocation2 + $0xf0] sm:$0xff] 0.0
          %324 = vst [vmem:[#allocation2 + $0xf8] sm:$0xff] 0.0
        $region48: #{tpu_custom_call.1} parent=31 // pred_fallthru
          _
        %v325 = vld [vmem:[%s241] sm:$0xff]
        %v326 = vld [vmem:[%s241 + $0x8] sm:$0xff]
        %v327 = vld [vmem:[%s241 + $0x10] sm:$0xff]
        %v328 = vld [vmem:[%s241 + $0x18] sm:$0xff]
        %v329 = vld [vmem:[%s241 + $0x20] sm:$0xff]
        %v330 = vld [vmem:[%s241 + $0x28] sm:$0xff]
        %v331 = vld [vmem:[%s241 + $0x30] sm:$0xff]
        %v332 = vld [vmem:[%s241 + $0x38] sm:$0xff]
        %v333 = vld [vmem:[%s241 + $0x40] sm:$0xff]
        %v334 = vld [vmem:[%s241 + $0x48] sm:$0xff]
        %v335 = vld [vmem:[%s241 + $0x50] sm:$0xff]
        %v336 = vld [vmem:[%s241 + $0x58] sm:$0xff]
        %v337 = vld [vmem:[%s241 + $0x60] sm:$0xff]
        %v338 = vld [vmem:[%s241 + $0x68] sm:$0xff]
        %v339 = vld [vmem:[%s241 + $0x70] sm:$0xff]
        %v340 = vld [vmem:[%s241 + $0x78] sm:$0xff]
        %v341 = vld [vmem:[%s241 + $0x80] sm:$0xff]
        %v342 = vld [vmem:[%s241 + $0x88] sm:$0xff]
        %v343 = vld [vmem:[%s241 + $0x90] sm:$0xff]
        %v344 = vld [vmem:[%s241 + $0x98] sm:$0xff]
        %v345 = vld [vmem:[%s241 + $0xa0] sm:$0xff]
        %v346 = vld [vmem:[%s241 + $0xa8] sm:$0xff]
        %v347 = vld [vmem:[%s241 + $0xb0] sm:$0xff]
        %v348 = vld [vmem:[%s241 + $0xb8] sm:$0xff]
        %v349 = vld [vmem:[%s241 + $0xc0] sm:$0xff]
        %v350 = vld [vmem:[%s241 + $0xc8] sm:$0xff]
        %v351 = vld [vmem:[%s241 + $0xd0] sm:$0xff]
        %v352 = vld [vmem:[%s241 + $0xd8] sm:$0xff]
        %v353 = vld [vmem:[%s241 + $0xe0] sm:$0xff]
        %v354 = vld [vmem:[%s241 + $0xe8] sm:$0xff]
        %v355 = vld [vmem:[%s241 + $0xf0] sm:$0xff]
        %v356 = vld [vmem:[%s241 + $0xf8] sm:$0xff]
        %v357 = vld [vmem:[%s250] sm:$0xff]
        %v358 = vld [vmem:[%s250 + $0x8] sm:$0xff]
        %v359 = vld [vmem:[%s250 + $0x10] sm:$0xff]
        %v360 = vld [vmem:[%s250 + $0x18] sm:$0xff]
        %v361 = vld [vmem:[%s250 + $0x20] sm:$0xff]
        %v362 = vld [vmem:[%s250 + $0x28] sm:$0xff]
        %v363 = vld [vmem:[%s250 + $0x30] sm:$0xff]
        %v364 = vld [vmem:[%s250 + $0x38] sm:$0xff]
        %v365 = vld [vmem:[%s250 + $0x40] sm:$0xff]
        %v366 = vld [vmem:[%s250 + $0x48] sm:$0xff]
        %v367 = vld [vmem:[%s250 + $0x50] sm:$0xff]
        %v368 = vld [vmem:[%s250 + $0x58] sm:$0xff]
        %v369 = vld [vmem:[%s250 + $0x60] sm:$0xff]
        %v370 = vld [vmem:[%s250 + $0x68] sm:$0xff]
        %v371 = vld [vmem:[%s250 + $0x70] sm:$0xff]
        %v372 = vld [vmem:[%s250 + $0x78] sm:$0xff]
        %v373 = vld [vmem:[%s250 + $0x80] sm:$0xff]
        %v374 = vld [vmem:[%s250 + $0x88] sm:$0xff]
        %v375 = vld [vmem:[%s250 + $0x90] sm:$0xff]
        %v376 = vld [vmem:[%s250 + $0x98] sm:$0xff]
        %v377 = vld [vmem:[%s250 + $0xa0] sm:$0xff]
        %v378 = vld [vmem:[%s250 + $0xa8] sm:$0xff]
        %v379 = vld [vmem:[%s250 + $0xb0] sm:$0xff]
        %v380 = vld [vmem:[%s250 + $0xb8] sm:$0xff]
        %v381 = vld [vmem:[%s250 + $0xc0] sm:$0xff]
        %v382 = vld [vmem:[%s250 + $0xc8] sm:$0xff]
        %v383 = vld [vmem:[%s250 + $0xd0] sm:$0xff]
        %v384 = vld [vmem:[%s250 + $0xd8] sm:$0xff]
        %v385 = vld [vmem:[%s250 + $0xe0] sm:$0xff]
        %v386 = vld [vmem:[%s250 + $0xe8] sm:$0xff]
        %v387 = vld [vmem:[%s250 + $0xf0] sm:$0xff]
        %v388 = vld [vmem:[%s250 + $0xf8] sm:$0xff]
        %vm389 = vcmp.ge.s32.totalorder %v357, 838861
        %vm390 = vcmp.ge.s32.totalorder %v358, 838861
        %vm391 = vcmp.ge.s32.totalorder %v359, 838861
        %vm392 = vcmp.ge.s32.totalorder %v360, 838861
        %vm393 = vcmp.ge.s32.totalorder %v361, 838861
        %vm394 = vcmp.ge.s32.totalorder %v362, 838861
        %vm395 = vcmp.ge.s32.totalorder %v363, 838861
        %vm396 = vcmp.ge.s32.totalorder %v364, 838861
        %vm397 = vcmp.ge.s32.totalorder %v365, 838861
        %vm398 = vcmp.ge.s32.totalorder %v366, 838861
        %vm399 = vcmp.ge.s32.totalorder %v367, 838861
        %vm400 = vcmp.ge.s32.totalorder %v368, 838861
        %vm401 = vcmp.ge.s32.totalorder %v369, 838861
        %vm402 = vcmp.ge.s32.totalorder %v370, 838861
        %vm403 = vcmp.ge.s32.totalorder %v371, 838861
        %vm404 = vcmp.ge.s32.totalorder %v372, 838861
        %vm405 = vcmp.ge.s32.totalorder %v373, 838861
        %vm406 = vcmp.ge.s32.totalorder %v374, 838861
        %vm407 = vcmp.ge.s32.totalorder %v375, 838861
        %vm408 = vcmp.ge.s32.totalorder %v376, 838861
        %vm409 = vcmp.ge.s32.totalorder %v377, 838861
        %vm410 = vcmp.ge.s32.totalorder %v378, 838861
        %vm411 = vcmp.ge.s32.totalorder %v379, 838861
        %vm412 = vcmp.ge.s32.totalorder %v380, 838861
        %vm413 = vcmp.ge.s32.totalorder %v381, 838861
        %vm414 = vcmp.ge.s32.totalorder %v382, 838861
        %vm415 = vcmp.ge.s32.totalorder %v383, 838861
        %vm416 = vcmp.ge.s32.totalorder %v384, 838861
        %vm417 = vcmp.ge.s32.totalorder %v385, 838861
        %vm418 = vcmp.ge.s32.totalorder %v386, 838861
        %vm419 = vcmp.ge.s32.totalorder %v387, 838861
        %vm420 = vcmp.ge.s32.totalorder %v388, 838861
        %v421 = vmul.f32 %v325, 1.1111112
        %v422 = vmul.f32 %v326, 1.1111112
        %v423 = vmul.f32 %v327, 1.1111112
        %v424 = vmul.f32 %v328, 1.1111112
        %v425 = vmul.f32 %v329, 1.1111112
        %v426 = vmul.f32 %v330, 1.1111112
        %v427 = vmul.f32 %v331, 1.1111112
        %v428 = vmul.f32 %v332, 1.1111112
        %v429 = vmul.f32 %v333, 1.1111112
        %v430 = vmul.f32 %v334, 1.1111112
        %v431 = vmul.f32 %v335, 1.1111112
        %v432 = vmul.f32 %v336, 1.1111112
        %v433 = vmul.f32 %v337, 1.1111112
        %v434 = vmul.f32 %v338, 1.1111112
        %v435 = vmul.f32 %v339, 1.1111112
        %v436 = vmul.f32 %v340, 1.1111112
        %v437 = vmul.f32 %v341, 1.1111112
        %v438 = vmul.f32 %v342, 1.1111112
        %v439 = vmul.f32 %v343, 1.1111112
        %v440 = vmul.f32 %v344, 1.1111112
        %v441 = vmul.f32 %v345, 1.1111112
        %v442 = vmul.f32 %v346, 1.1111112
        %v443 = vmul.f32 %v347, 1.1111112
        %v444 = vmul.f32 %v348, 1.1111112
        %v445 = vmul.f32 %v349, 1.1111112
        %v446 = vmul.f32 %v350, 1.1111112
        %v447 = vmul.f32 %v351, 1.1111112
        %v448 = vmul.f32 %v352, 1.1111112
        %v449 = vmul.f32 %v353, 1.1111112
        %v450 = vmul.f32 %v354, 1.1111112
        %v451 = vmul.f32 %v355, 1.1111112
        %v452 = vmul.f32 %v356, 1.1111112
        %v453 = vsel %vm389, %v421, 0.0
        %v454 = vsel %vm390, %v422, 0.0
        %v455 = vsel %vm391, %v423, 0.0
        %v456 = vsel %vm392, %v424, 0.0
        %v457 = vsel %vm393, %v425, 0.0
        %v458 = vsel %vm394, %v426, 0.0
        %v459 = vsel %vm395, %v427, 0.0
        %v460 = vsel %vm396, %v428, 0.0
        %v461 = vsel %vm397, %v429, 0.0
        %v462 = vsel %vm398, %v430, 0.0
        %v463 = vsel %vm399, %v431, 0.0
        %v464 = vsel %vm400, %v432, 0.0
        %v465 = vsel %vm401, %v433, 0.0
        %v466 = vsel %vm402, %v434, 0.0
        %v467 = vsel %vm403, %v435, 0.0
        %v468 = vsel %vm404, %v436, 0.0
        %v469 = vsel %vm405, %v437, 0.0
        %v470 = vsel %vm406, %v438, 0.0
        %v471 = vsel %vm407, %v439, 0.0
        %v472 = vsel %vm408, %v440, 0.0
        %v473 = vsel %vm409, %v441, 0.0
        %v474 = vsel %vm410, %v442, 0.0
        %v475 = vsel %vm411, %v443, 0.0
        %v476 = vsel %vm412, %v444, 0.0
        %v477 = vsel %vm413, %v445, 0.0
        %v478 = vsel %vm414, %v446, 0.0
        %v479 = vsel %vm415, %v447, 0.0
        %v480 = vsel %vm416, %v448, 0.0
        %v481 = vsel %vm417, %v449, 0.0
        %v482 = vsel %vm418, %v450, 0.0
        %v483 = vsel %vm419, %v451, 0.0
        %v484 = vsel %vm420, %v452, 0.0
        %v485 = vld [vmem:[#allocation2] sm:$0xff]
        %v486 = vld [vmem:[#allocation2 + $0x8] sm:$0xff]
        %v487 = vld [vmem:[#allocation2 + $0x10] sm:$0xff]
        %v488 = vld [vmem:[#allocation2 + $0x18] sm:$0xff]
        %v489 = vld [vmem:[#allocation2 + $0x20] sm:$0xff]
        %v490 = vld [vmem:[#allocation2 + $0x28] sm:$0xff]
        %v491 = vld [vmem:[#allocation2 + $0x30] sm:$0xff]
        %v492 = vld [vmem:[#allocation2 + $0x38] sm:$0xff]
        %v493 = vld [vmem:[#allocation2 + $0x40] sm:$0xff]
        %v494 = vld [vmem:[#allocation2 + $0x48] sm:$0xff]
        %v495 = vld [vmem:[#allocation2 + $0x50] sm:$0xff]
        %v496 = vld [vmem:[#allocation2 + $0x58] sm:$0xff]
        %v497 = vld [vmem:[#allocation2 + $0x60] sm:$0xff]
        %v498 = vld [vmem:[#allocation2 + $0x68] sm:$0xff]
        %v499 = vld [vmem:[#allocation2 + $0x70] sm:$0xff]
        %v500 = vld [vmem:[#allocation2 + $0x78] sm:$0xff]
        %v501 = vld [vmem:[#allocation2 + $0x80] sm:$0xff]
        %v502 = vld [vmem:[#allocation2 + $0x88] sm:$0xff]
        %v503 = vld [vmem:[#allocation2 + $0x90] sm:$0xff]
        %v504 = vld [vmem:[#allocation2 + $0x98] sm:$0xff]
        %v505 = vld [vmem:[#allocation2 + $0xa0] sm:$0xff]
        %v506 = vld [vmem:[#allocation2 + $0xa8] sm:$0xff]
        %v507 = vld [vmem:[#allocation2 + $0xb0] sm:$0xff]
        %v508 = vld [vmem:[#allocation2 + $0xb8] sm:$0xff]
        %v509 = vld [vmem:[#allocation2 + $0xc0] sm:$0xff]
        %v510 = vld [vmem:[#allocation2 + $0xc8] sm:$0xff]
        %v511 = vld [vmem:[#allocation2 + $0xd0] sm:$0xff]
        %v512 = vld [vmem:[#allocation2 + $0xd8] sm:$0xff]
        %v513 = vld [vmem:[#allocation2 + $0xe0] sm:$0xff]
        %v514 = vld [vmem:[#allocation2 + $0xe8] sm:$0xff]
        %v515 = vld [vmem:[#allocation2 + $0xf0] sm:$0xff]
        %v516 = vld [vmem:[#allocation2 + $0xf8] sm:$0xff]
        %v517 = vld [vmem:[%s232] sm:$0xff]
        %v518 = vld [vmem:[%s232 + $0x8] sm:$0xff]
        %v519 = vld [vmem:[%s232 + $0x10] sm:$0xff]
        %v520 = vld [vmem:[%s232 + $0x18] sm:$0xff]
        %v521 = vld [vmem:[%s232 + $0x20] sm:$0xff]
        %v522 = vld [vmem:[%s232 + $0x28] sm:$0xff]
        %v523 = vld [vmem:[%s232 + $0x30] sm:$0xff]
        %v524 = vld [vmem:[%s232 + $0x38] sm:$0xff]
        %v525 = vld [vmem:[%s232 + $0x40] sm:$0xff]
        %v526 = vld [vmem:[%s232 + $0x48] sm:$0xff]
        %v527 = vld [vmem:[%s232 + $0x50] sm:$0xff]
        %v528 = vld [vmem:[%s232 + $0x58] sm:$0xff]
        %v529 = vld [vmem:[%s232 + $0x60] sm:$0xff]
        %v530 = vld [vmem:[%s232 + $0x68] sm:$0xff]
        %v531 = vld [vmem:[%s232 + $0x70] sm:$0xff]
        %v532 = vld [vmem:[%s232 + $0x78] sm:$0xff]
        %v533 = vld [vmem:[%s232 + $0x80] sm:$0xff]
        %v534 = vld [vmem:[%s232 + $0x88] sm:$0xff]
        %v535 = vld [vmem:[%s232 + $0x90] sm:$0xff]
        %v536 = vld [vmem:[%s232 + $0x98] sm:$0xff]
        %v537 = vld [vmem:[%s232 + $0xa0] sm:$0xff]
        %v538 = vld [vmem:[%s232 + $0xa8] sm:$0xff]
        %v539 = vld [vmem:[%s232 + $0xb0] sm:$0xff]
        %v540 = vld [vmem:[%s232 + $0xb8] sm:$0xff]
        %v541 = vld [vmem:[%s232 + $0xc0] sm:$0xff]
        %v542 = vld [vmem:[%s232 + $0xc8] sm:$0xff]
        %v543 = vld [vmem:[%s232 + $0xd0] sm:$0xff]
        %v544 = vld [vmem:[%s232 + $0xd8] sm:$0xff]
        %v545 = vld [vmem:[%s232 + $0xe0] sm:$0xff]
        %v546 = vld [vmem:[%s232 + $0xe8] sm:$0xff]
        %v547 = vld [vmem:[%s232 + $0xf0] sm:$0xff]
        %v548 = vld [vmem:[%s232 + $0xf8] sm:$0xff]
        %v549 = vpack.c.bf16 %v454, %v453
        %v550 = vpack.c.bf16 %v456, %v455
        %v551 = vpack.c.bf16 %v458, %v457
        %v552 = vpack.c.bf16 %v460, %v459
        %v553 = vpack.c.bf16 %v462, %v461
        %v554 = vpack.c.bf16 %v464, %v463
        %v555 = vpack.c.bf16 %v466, %v465
        %v556 = vpack.c.bf16 %v468, %v467
        %v557 = vpack.c.bf16 %v470, %v469
        %v558 = vpack.c.bf16 %v472, %v471
        %v559 = vpack.c.bf16 %v474, %v473
        %v560 = vpack.c.bf16 %v476, %v475
        %v561 = vpack.c.bf16 %v478, %v477
        %v562 = vpack.c.bf16 %v480, %v479
        %v563 = vpack.c.bf16 %v482, %v481
        %v564 = vpack.c.bf16 %v484, %v483
        %v597 = vunpack.c.l.b16 %v517
        %v598 = vunpack.c.h.b16 %v517
        %v599 = vunpack.c.l.b16 %v518
        %v600 = vunpack.c.h.b16 %v518
        %v601 = vunpack.c.l.b16 %v519
        %v602 = vunpack.c.h.b16 %v519
        %v603 = vunpack.c.l.b16 %v520
        %v604 = vunpack.c.h.b16 %v520
        %v605 = vunpack.c.l.b16 %v521
        %v606 = vunpack.c.h.b16 %v521
        %v607 = vunpack.c.l.b16 %v522
        %v608 = vunpack.c.h.b16 %v522
        %v609 = vunpack.c.l.b16 %v523
        %v610 = vunpack.c.h.b16 %v523
        %v611 = vunpack.c.l.b16 %v524
        %v612 = vunpack.c.h.b16 %v524
        %v613 = vunpack.c.l.b16 %v525
        %v614 = vunpack.c.h.b16 %v525
        %v615 = vunpack.c.l.b16 %v526
        %v616 = vunpack.c.h.b16 %v526
        %v617 = vunpack.c.l.b16 %v527
        %v618 = vunpack.c.h.b16 %v527
        %v619 = vunpack.c.l.b16 %v528
        %v620 = vunpack.c.h.b16 %v528
        %v621 = vunpack.c.l.b16 %v529
        %v622 = vunpack.c.h.b16 %v529
        %v623 = vunpack.c.l.b16 %v530
        %v624 = vunpack.c.h.b16 %v530
        %v625 = vunpack.c.l.b16 %v531
        %v626 = vunpack.c.h.b16 %v531
        %v627 = vunpack.c.l.b16 %v532
        %v628 = vunpack.c.h.b16 %v532
        %v629 = vunpack.c.l.b16 %v533
        %v630 = vunpack.c.h.b16 %v533
        %v631 = vunpack.c.l.b16 %v534
        %v632 = vunpack.c.h.b16 %v534
        %v633 = vunpack.c.l.b16 %v535
        %v634 = vunpack.c.h.b16 %v535
        %v635 = vunpack.c.l.b16 %v536
        %v636 = vunpack.c.h.b16 %v536
        %v637 = vunpack.c.l.b16 %v537
        %v638 = vunpack.c.h.b16 %v537
        %v639 = vunpack.c.l.b16 %v538
        %v640 = vunpack.c.h.b16 %v538
        %v641 = vunpack.c.l.b16 %v539
        %v642 = vunpack.c.h.b16 %v539
        %v643 = vunpack.c.l.b16 %v540
        %v644 = vunpack.c.h.b16 %v540
        %v645 = vunpack.c.l.b16 %v541
        %v646 = vunpack.c.h.b16 %v541
        %v647 = vunpack.c.l.b16 %v542
        %v648 = vunpack.c.h.b16 %v542
        %v649 = vunpack.c.l.b16 %v543
        %v650 = vunpack.c.h.b16 %v543
        %v651 = vunpack.c.l.b16 %v544
        %v652 = vunpack.c.h.b16 %v544
        %v653 = vunpack.c.l.b16 %v545
        %v654 = vunpack.c.h.b16 %v545
        %v655 = vunpack.c.l.b16 %v546
        %v656 = vunpack.c.h.b16 %v546
        %v657 = vunpack.c.l.b16 %v547
        %v658 = vunpack.c.h.b16 %v547
        %v659 = vunpack.c.l.b16 %v548
        %v660 = vunpack.c.h.b16 %v548
        %v661 = vpack.c.b16 %v599, %v597
        %v662 = vpack.c.b16 %v600, %v598
        %v663 = vpack.c.b16 %v603, %v601
        %v664 = vpack.c.b16 %v604, %v602
        %v665 = vpack.c.b16 %v607, %v605
        %v666 = vpack.c.b16 %v608, %v606
        %v667 = vpack.c.b16 %v611, %v609
        %v668 = vpack.c.b16 %v612, %v610
        %v669 = vpack.c.b16 %v615, %v613
        %v670 = vpack.c.b16 %v616, %v614
        %v671 = vpack.c.b16 %v619, %v617
        %v672 = vpack.c.b16 %v620, %v618
        %v673 = vpack.c.b16 %v623, %v621
        %v674 = vpack.c.b16 %v624, %v622
        %v675 = vpack.c.b16 %v627, %v625
        %v676 = vpack.c.b16 %v628, %v626
        %v677 = vpack.c.b16 %v631, %v629
        %v678 = vpack.c.b16 %v632, %v630
        %v679 = vpack.c.b16 %v635, %v633
        %v680 = vpack.c.b16 %v636, %v634
        %v681 = vpack.c.b16 %v639, %v637
        %v682 = vpack.c.b16 %v640, %v638
        %v683 = vpack.c.b16 %v643, %v641
        %v684 = vpack.c.b16 %v644, %v642
        %v685 = vpack.c.b16 %v647, %v645
        %v686 = vpack.c.b16 %v648, %v646
        %v687 = vpack.c.b16 %v651, %v649
        %v688 = vpack.c.b16 %v652, %v650
        %v689 = vpack.c.b16 %v655, %v653
        %v690 = vpack.c.b16 %v656, %v654
        %v691 = vpack.c.b16 %v659, %v657
        %v692 = vpack.c.b16 %v660, %v658
        %725 = vmatprep.subr.bf16.mxu0 0
        %726 = vmatpush1.bf16.msra.mxu0 %v549
        %727 = vmatprep.subr.bf16.mxu0 0
        %728 = vmatpush1.bf16.msra.mxu0 %v550
        %729 = vmatprep.subr.bf16.mxu0 0
        %730 = vmatpush1.bf16.msra.mxu0 %v551
        %731 = vmatprep.subr.bf16.mxu0 0
        %732 = vmatpush1.bf16.msra.mxu0 %v552
        %733 = vmatprep.subr.bf16.mxu0 0
        %734 = vmatpush1.bf16.msra.mxu0 %v553
        %735 = vmatprep.subr.bf16.mxu0 0
        %736 = vmatpush1.bf16.msra.mxu0 %v554
        %737 = vmatprep.subr.bf16.mxu0 0
        %738 = vmatpush1.bf16.msra.mxu0 %v555
        %739 = vmatprep.subr.bf16.mxu0 0
        %740 = vmatpush1.bf16.msra.mxu0 %v556
        %741 = vmatprep.subr.bf16.mxu0 0
        %742 = vmatpush1.bf16.msra.mxu0 %v557
        %743 = vmatprep.subr.bf16.mxu0 0
        %744 = vmatpush1.bf16.msra.mxu0 %v558
        %745 = vmatprep.subr.bf16.mxu0 0
        %746 = vmatpush1.bf16.msra.mxu0 %v559
        %747 = vmatprep.subr.bf16.mxu0 0
        %748 = vmatpush1.bf16.msra.mxu0 %v560
        %749 = vmatprep.subr.bf16.mxu0 0
        %750 = vmatpush1.bf16.msra.mxu0 %v561
        %751 = vmatprep.subr.bf16.mxu0 0
        %752 = vmatpush1.bf16.msra.mxu0 %v562
        %753 = vmatprep.subr.bf16.mxu0 0
        %754 = vmatpush1.bf16.msra.mxu0 %v563
        %755 = vmatprep.subr.bf16.mxu0 0
        %756 = vmatpush1.bf16.msra.mxu0 %v564
        %757 = vmatprep.mubr.bf16.mxu0 %v662
        %758 = vmatmul.mubr.bf16.gmra.mrb[0].mxu0 %v661
        %v759 = vpop.f32.mrb[0].mxu0
        %v760 = vadd.f32 0.0, %v759
        %v761 = vpop.f32.mrb[0].mxu0
        %v762 = vpop.f32.mrb[0].mxu0
        %v763 = vadd.f32 0.0, %v762
        %v764 = vpop.f32.mrb[0].mxu0
        %765 = vmatprep.mubr.bf16.mxu0 %v664
        %766 = vmatmul.mubr.bf16.gmra.mrb[0].mxu0 %v663
        %v767 = vpop.f32.mrb[0].mxu0
        %v768 = vadd.f32 0.0, %v767
        %v769 = vpop.f32.mrb[0].mxu0
        %v770 = vpop.f32.mrb[0].mxu0
        %v771 = vadd.f32 0.0, %v770
        %v772 = vpop.f32.mrb[0].mxu0
        %773 = vmatprep.mubr.bf16.mxu0 %v666
        %774 = vmatmul.mubr.bf16.gmra.mrb[0].mxu0 %v665
        %v775 = vpop.f32.mrb[0].mxu0
        %v776 = vadd.f32 0.0, %v775
        %v777 = vpop.f32.mrb[0].mxu0
        %v778 = vpop.f32.mrb[0].mxu0
        %v779 = vadd.f32 0.0, %v778
        %v780 = vpop.f32.mrb[0].mxu0
        %781 = vmatprep.mubr.bf16.mxu0 %v668
        %782 = vmatmul.mubr.bf16.gmra.mrb[0].mxu0 %v667
        %v783 = vpop.f32.mrb[0].mxu0
        %v784 = vadd.f32 0.0, %v783
        %v785 = vpop.f32.mrb[0].mxu0
        %v786 = vpop.f32.mrb[0].mxu0
        %v787 = vadd.f32 0.0, %v786
        %v788 = vpop.f32.mrb[0].mxu0
        %789 = vmatprep.mubr.bf16.mxu0 %v670
        %790 = vmatmul.mubr.bf16.gmra.mrb[0].mxu0 %v669
        %v791 = vpop.f32.mrb[0].mxu0
        %v792 = vadd.f32 0.0, %v791
        %v793 = vpop.f32.mrb[0].mxu0
        %v794 = vpop.f32.mrb[0].mxu0
        %v795 = vadd.f32 0.0, %v794
        %v796 = vpop.f32.mrb[0].mxu0
        %797 = vmatprep.mubr.bf16.mxu0 %v672
        %798 = vmatmul.mubr.bf16.gmra.mrb[0].mxu0 %v671
        %v799 = vpop.f32.mrb[0].mxu0
        %v800 = vadd.f32 0.0, %v799
        %v801 = vpop.f32.mrb[0].mxu0
        %v802 = vpop.f32.mrb[0].mxu0
        %v803 = vadd.f32 0.0, %v802
        %v804 = vpop.f32.mrb[0].mxu0
        %805 = vmatprep.mubr.bf16.mxu0 %v674
        %806 = vmatmul.mubr.bf16.gmra.mrb[0].mxu0 %v673
        %v807 = vpop.f32.mrb[0].mxu0
        %v808 = vadd.f32 0.0, %v807
        %v809 = vpop.f32.mrb[0].mxu0
        %v810 = vpop.f32.mrb[0].mxu0
        %v811 = vadd.f32 0.0, %v810
        %v812 = vpop.f32.mrb[0].mxu0
        %813 = vmatprep.mubr.bf16.mxu0 %v676
        %814 = vmatmul.mubr.bf16.gmra.mrb[0].mxu0 %v675
        %v815 = vpop.f32.mrb[0].mxu0
        %v816 = vadd.f32 0.0, %v815
        %v817 = vpop.f32.mrb[0].mxu0
        %v818 = vpop.f32.mrb[0].mxu0
        %v819 = vadd.f32 0.0, %v818
        %v820 = vpop.f32.mrb[0].mxu0
        %821 = vmatprep.mubr.bf16.mxu0 %v678
        %822 = vmatmul.mubr.bf16.gmra.mrb[0].mxu0 %v677
        %v823 = vpop.f32.mrb[0].mxu0
        %v824 = vadd.f32 0.0, %v823
        %v825 = vpop.f32.mrb[0].mxu0
        %v826 = vpop.f32.mrb[0].mxu0
        %v827 = vadd.f32 0.0, %v826
        %v828 = vpop.f32.mrb[0].mxu0
        %829 = vmatprep.mubr.bf16.mxu0 %v680
        %830 = vmatmul.mubr.bf16.gmra.mrb[0].mxu0 %v679
        %v831 = vpop.f32.mrb[0].mxu0
        %v832 = vadd.f32 0.0, %v831
        %v833 = vpop.f32.mrb[0].mxu0
        %v834 = vpop.f32.mrb[0].mxu0
        %v835 = vadd.f32 0.0, %v834
        %v836 = vpop.f32.mrb[0].mxu0
        %837 = vmatprep.mubr.bf16.mxu0 %v682
        %838 = vmatmul.mubr.bf16.gmra.mrb[0].mxu0 %v681
        %v839 = vpop.f32.mrb[0].mxu0
        %v840 = vadd.f32 0.0, %v839
        %v841 = vpop.f32.mrb[0].mxu0
        %v842 = vpop.f32.mrb[0].mxu0
        %v843 = vadd.f32 0.0, %v842
        %v844 = vpop.f32.mrb[0].mxu0
        %845 = vmatprep.mubr.bf16.mxu0 %v684
        %846 = vmatmul.mubr.bf16.gmra.mrb[0].mxu0 %v683
        %v847 = vpop.f32.mrb[0].mxu0
        %v848 = vadd.f32 0.0, %v847
        %v849 = vpop.f32.mrb[0].mxu0
        %v850 = vpop.f32.mrb[0].mxu0
        %v851 = vadd.f32 0.0, %v850
        %v852 = vpop.f32.mrb[0].mxu0
        %853 = vmatprep.mubr.bf16.mxu0 %v686
        %854 = vmatmul.mubr.bf16.gmra.mrb[0].mxu0 %v685
        %v855 = vpop.f32.mrb[0].mxu0
        %v856 = vadd.f32 0.0, %v855
        %v857 = vpop.f32.mrb[0].mxu0
        %v858 = vpop.f32.mrb[0].mxu0
        %v859 = vadd.f32 0.0, %v858
        %v860 = vpop.f32.mrb[0].mxu0
        %861 = vmatprep.mubr.bf16.mxu0 %v688
        %862 = vmatmul.mubr.bf16.gmra.mrb[0].mxu0 %v687
        %v863 = vpop.f32.mrb[0].mxu0
        %v864 = vadd.f32 0.0, %v863
        %v865 = vpop.f32.mrb[0].mxu0
        %v866 = vpop.f32.mrb[0].mxu0
        %v867 = vadd.f32 0.0, %v866
        %v868 = vpop.f32.mrb[0].mxu0
        %869 = vmatprep.mubr.bf16.mxu0 %v690
        %870 = vmatmul.mubr.bf16.gmra.mrb[0].mxu0 %v689
        %v871 = vpop.f32.mrb[0].mxu0
        %v872 = vadd.f32 0.0, %v871
        %v873 = vpop.f32.mrb[0].mxu0
        %v874 = vpop.f32.mrb[0].mxu0
        %v875 = vadd.f32 0.0, %v874
        %v876 = vpop.f32.mrb[0].mxu0
        %877 = vmatprep.mubr.bf16.mxu0 %v692
        %878 = vmatmul.mubr.bf16.gmra.mrb[0].mxu0 %v691
        %v879 = vpop.f32.mrb[0].mxu0
        %v880 = vadd.f32 0.0, %v879
        %v881 = vpop.f32.mrb[0].mxu0
        %v882 = vpop.f32.mrb[0].mxu0
        %v883 = vadd.f32 0.0, %v882
        %v884 = vpop.f32.mrb[0].mxu0
        %885 = vdwg.mxu0
        %v886 = vadd.f32 %v485, %v760
        %v887 = vadd.f32 %v486, %v763
        %v888 = vadd.f32 %v487, %v768
        %v889 = vadd.f32 %v488, %v771
        %v890 = vadd.f32 %v489, %v776
        %v891 = vadd.f32 %v490, %v779
        %v892 = vadd.f32 %v491, %v784
        %v893 = vadd.f32 %v492, %v787
        %v894 = vadd.f32 %v493, %v792
        %v895 = vadd.f32 %v494, %v795
        %v896 = vadd.f32 %v495, %v800
        %v897 = vadd.f32 %v496, %v803
        %v898 = vadd.f32 %v497, %v808
        %v899 = vadd.f32 %v498, %v811
        %v900 = vadd.f32 %v499, %v816
        %v901 = vadd.f32 %v500, %v819
        %v902 = vadd.f32 %v501, %v824
        %v903 = vadd.f32 %v502, %v827
        %v904 = vadd.f32 %v503, %v832
        %v905 = vadd.f32 %v504, %v835
        %v906 = vadd.f32 %v505, %v840
        %v907 = vadd.f32 %v506, %v843
        %v908 = vadd.f32 %v507, %v848
        %v909 = vadd.f32 %v508, %v851
        %v910 = vadd.f32 %v509, %v856
        %v911 = vadd.f32 %v510, %v859
        %v912 = vadd.f32 %v511, %v864
        %v913 = vadd.f32 %v512, %v867
        %v914 = vadd.f32 %v513, %v872
        %v915 = vadd.f32 %v514, %v875
        %v916 = vadd.f32 %v515, %v880
        %v917 = vadd.f32 %v516, %v883
        %918 = vst [vmem:[#allocation2] sm:$0xff] %v886
        %919 = vst [vmem:[#allocation2 + $0x8] sm:$0xff] %v887
        %920 = vst [vmem:[#allocation2 + $0x10] sm:$0xff] %v888
        %921 = vst [vmem:[#allocation2 + $0x18] sm:$0xff] %v889
        %922 = vst [vmem:[#allocation2 + $0x20] sm:$0xff] %v890
        %923 = vst [vmem:[#allocation2 + $0x28] sm:$0xff] %v891
        %924 = vst [vmem:[#allocation2 + $0x30] sm:$0xff] %v892
        %925 = vst [vmem:[#allocation2 + $0x38] sm:$0xff] %v893
        %926 = vst [vmem:[#allocation2 + $0x40] sm:$0xff] %v894
        %927 = vst [vmem:[#allocation2 + $0x48] sm:$0xff] %v895
        %928 = vst [vmem:[#allocation2 + $0x50] sm:$0xff] %v896
        %929 = vst [vmem:[#allocation2 + $0x58] sm:$0xff] %v897
        %930 = vst [vmem:[#allocation2 + $0x60] sm:$0xff] %v898
        %931 = vst [vmem:[#allocation2 + $0x68] sm:$0xff] %v899
        %932 = vst [vmem:[#allocation2 + $0x70] sm:$0xff] %v900
        %933 = vst [vmem:[#allocation2 + $0x78] sm:$0xff] %v901
        %934 = vst [vmem:[#allocation2 + $0x80] sm:$0xff] %v902
        %935 = vst [vmem:[#allocation2 + $0x88] sm:$0xff] %v903
        %936 = vst [vmem:[#allocation2 + $0x90] sm:$0xff] %v904
        %937 = vst [vmem:[#allocation2 + $0x98] sm:$0xff] %v905
        %938 = vst [vmem:[#allocation2 + $0xa0] sm:$0xff] %v906
        %939 = vst [vmem:[#allocation2 + $0xa8] sm:$0xff] %v907
        %940 = vst [vmem:[#allocation2 + $0xb0] sm:$0xff] %v908
        %941 = vst [vmem:[#allocation2 + $0xb8] sm:$0xff] %v909
        %942 = vst [vmem:[#allocation2 + $0xc0] sm:$0xff] %v910
        %943 = vst [vmem:[#allocation2 + $0xc8] sm:$0xff] %v911
        %944 = vst [vmem:[#allocation2 + $0xd0] sm:$0xff] %v912
        %945 = vst [vmem:[#allocation2 + $0xd8] sm:$0xff] %v913
        %946 = vst [vmem:[#allocation2 + $0xe0] sm:$0xff] %v914
        %947 = vst [vmem:[#allocation2 + $0xe8] sm:$0xff] %v915
        %948 = vst [vmem:[#allocation2 + $0xf0] sm:$0xff] %v916
        %949 = vst [vmem:[#allocation2 + $0xf8] sm:$0xff] %v917
        %p950 = scmp.eq.s32.totalorder %s28, 1
        // Predicated region
        $region49: #{tpu_custom_call.1} parent=31 // pred_check
          %p951 = pneg %p950
        $region50: #{tpu_custom_call.1} parent=31 // pred_check_branch
          %953 = sbr.rel (%p951) target = $region52
        $region51: #{tpu_custom_call.1} parent=31 // pred_region
          %v954 = vld [vmem:[#allocation2] sm:$0xff]
          %v955 = vld [vmem:[#allocation2 + $0x8] sm:$0xff]
          %v956 = vld [vmem:[#allocation2 + $0x10] sm:$0xff]
          %v957 = vld [vmem:[#allocation2 + $0x18] sm:$0xff]
          %v958 = vld [vmem:[#allocation2 + $0x20] sm:$0xff]
          %v959 = vld [vmem:[#allocation2 + $0x28] sm:$0xff]
          %v960 = vld [vmem:[#allocation2 + $0x30] sm:$0xff]
          %v961 = vld [vmem:[#allocation2 + $0x38] sm:$0xff]
          %v962 = vld [vmem:[#allocation2 + $0x40] sm:$0xff]
          %v963 = vld [vmem:[#allocation2 + $0x48] sm:$0xff]
          %v964 = vld [vmem:[#allocation2 + $0x50] sm:$0xff]
          %v965 = vld [vmem:[#allocation2 + $0x58] sm:$0xff]
          %v966 = vld [vmem:[#allocation2 + $0x60] sm:$0xff]
          %v967 = vld [vmem:[#allocation2 + $0x68] sm:$0xff]
          %v968 = vld [vmem:[#allocation2 + $0x70] sm:$0xff]
          %v969 = vld [vmem:[#allocation2 + $0x78] sm:$0xff]
          %v970 = vld [vmem:[#allocation2 + $0x80] sm:$0xff]
          %v971 = vld [vmem:[#allocation2 + $0x88] sm:$0xff]
          %v972 = vld [vmem:[#allocation2 + $0x90] sm:$0xff]
          %v973 = vld [vmem:[#allocation2 + $0x98] sm:$0xff]
          %v974 = vld [vmem:[#allocation2 + $0xa0] sm:$0xff]
          %v975 = vld [vmem:[#allocation2 + $0xa8] sm:$0xff]
          %v976 = vld [vmem:[#allocation2 + $0xb0] sm:$0xff]
          %v977 = vld [vmem:[#allocation2 + $0xb8] sm:$0xff]
          %v978 = vld [vmem:[#allocation2 + $0xc0] sm:$0xff]
          %v979 = vld [vmem:[#allocation2 + $0xc8] sm:$0xff]
          %v980 = vld [vmem:[#allocation2 + $0xd0] sm:$0xff]
          %v981 = vld [vmem:[#allocation2 + $0xd8] sm:$0xff]
          %v982 = vld [vmem:[#allocation2 + $0xe0] sm:$0xff]
          %v983 = vld [vmem:[#allocation2 + $0xe8] sm:$0xff]
          %v984 = vld [vmem:[#allocation2 + $0xf0] sm:$0xff]
          %v985 = vld [vmem:[#allocation2 + $0xf8] sm:$0xff]
          %986 = vst [vmem:[%s282] sm:$0xff] %v954
          %987 = vst [vmem:[%s282 + $0x8] sm:$0xff] %v955
          %988 = vst [vmem:[%s282 + $0x10] sm:$0xff] %v956
          %989 = vst [vmem:[%s282 + $0x18] sm:$0xff] %v957
          %990 = vst [vmem:[%s282 + $0x20] sm:$0xff] %v958
          %991 = vst [vmem:[%s282 + $0x28] sm:$0xff] %v959
          %992 = vst [vmem:[%s282 + $0x30] sm:$0xff] %v960
          %993 = vst [vmem:[%s282 + $0x38] sm:$0xff] %v961
          %994 = vst [vmem:[%s282 + $0x40] sm:$0xff] %v962
          %995 = vst [vmem:[%s282 + $0x48] sm:$0xff] %v963
          %996 = vst [vmem:[%s282 + $0x50] sm:$0xff] %v964
          %997 = vst [vmem:[%s282 + $0x58] sm:$0xff] %v965
          %998 = vst [vmem:[%s282 + $0x60] sm:$0xff] %v966
          %999 = vst [vmem:[%s282 + $0x68] sm:$0xff] %v967
          %1000 = vst [vmem:[%s282 + $0x70] sm:$0xff] %v968
          %1001 = vst [vmem:[%s282 + $0x78] sm:$0xff] %v969
          %1002 = vst [vmem:[%s282 + $0x80] sm:$0xff] %v970
          %1003 = vst [vmem:[%s282 + $0x88] sm:$0xff] %v971
          %1004 = vst [vmem:[%s282 + $0x90] sm:$0xff] %v972
          %1005 = vst [vmem:[%s282 + $0x98] sm:$0xff] %v973
          %1006 = vst [vmem:[%s282 + $0xa0] sm:$0xff] %v974
          %1007 = vst [vmem:[%s282 + $0xa8] sm:$0xff] %v975
          %1008 = vst [vmem:[%s282 + $0xb0] sm:$0xff] %v976
          %1009 = vst [vmem:[%s282 + $0xb8] sm:$0xff] %v977
          %1010 = vst [vmem:[%s282 + $0xc0] sm:$0xff] %v978
          %1011 = vst [vmem:[%s282 + $0xc8] sm:$0xff] %v979
          %1012 = vst [vmem:[%s282 + $0xd0] sm:$0xff] %v980
          %1013 = vst [vmem:[%s282 + $0xd8] sm:$0xff] %v981
          %1014 = vst [vmem:[%s282 + $0xe0] sm:$0xff] %v982
          %1015 = vst [vmem:[%s282 + $0xe8] sm:$0xff] %v983
          %1016 = vst [vmem:[%s282 + $0xf0] sm:$0xff] %v984
          %1017 = vst [vmem:[%s282 + $0xf8] sm:$0xff] %v985
        $region52: #{tpu_custom_call.1} parent=31 // pred_fallthru
          _
        %s1018 = sand.u32 %s123, 1
        %s1019 = scalar_lea.sflag [#allocation5], %s1018
        %s1020 = sand.u32 %s123, 1
        %s1021 = smul.addr %s1020, 256
        %s1022 = scalar_lea.vmem [#allocation9], %s1021
        // Predicated region
        $region53: #{tpu_custom_call.1} parent=31 // pred_check
          %p1023 = pneg %p133
        $region54: #{tpu_custom_call.1} parent=31 // pred_check_branch
          %1025 = sbr.rel (%p1023) target = $region56
        $region55: #{tpu_custom_call.1} parent=31 // pred_region
          %s1026 = smul.u32 32, %s27
          %s1028 = ssub.s32 4096, 4096
          %1029 = vsyncadd %s1019, %s1028
          %s1030 = smul.addr %s1026, 128
          %s1031 = scalar_lea.hbm %s3, %s1030
          %s1032 = sshll.u32 %s1022, 4
          %s1033 = int_to_ptr.vmem [resolvable:$true] %s1032
          %1038 = dma.vmem_to_hbm [thread:$0]  %s1033, 4096, %s1031, %s1019, 128, 128, 8
        $region56: #{tpu_custom_call.1} parent=31 // pred_fallthru
          _
      $region32: #{tpu_custom_call.1} parent=5 // pred_fallthru
        _
      %p1039 = scmp.le.s32.totalorder 2, %s18
      // Predicated region
      $region57: #{tpu_custom_call.1} parent=5 // pred_check
        %p1040 = pneg %p1039
      $region58: #{tpu_custom_call.1} parent=5 // pred_check_branch
        %1042 = sbr.rel (%p1040) target = $region60
      $region59: #{tpu_custom_call.1} parent=5 // pred_region
        %s1043 = ssub.s32 %s18, 2
        // Predicated region
        $region61: #{tpu_custom_call.1} parent=59 // pred_check
          %p1044 = pneg %p139
        $region62: #{tpu_custom_call.1} parent=59 // pred_check_branch
          %1046 = sbr.rel (%p1044) target = $region64
        $region63: #{tpu_custom_call.1} parent=59 // pred_region
          %s1047 = sand.u32 %s124, 1
          %s1048 = scalar_lea.sflag [#allocation5], %s1047
          %s1049 = sand.u32 %s124, 1
          %s1050 = smul.addr %s1049, 256
          %s1051 = scalar_lea.vmem [#allocation9], %s1050
          %1052 = dma.done %s1048, 4096
        $region64: #{tpu_custom_call.1} parent=59 // pred_fallthru
          _
      $region60: #{tpu_custom_call.1} parent=5 // pred_fallthru
        _
    $region6: #{tpu_custom_call.1} parent=1 // loop_footer
      %s22 = sadd.s32 1, %s18
    $region7: #{tpu_custom_call.1} parent=1 // loop_footer_branch
      %17 = sbr.rel target = $region3
    $region8: #{tpu_custom_call.1} parent=1 // loop_exit
      _
    %1053 = vsyncpa [#allocation4], 1
    %s1054 = scalar_lea.sflag [#allocation4], 1
    %1055 = vsyncpa %s1054, 1
    %1056 = vsyncpa [#allocation7], 1
    %s1057 = scalar_lea.sflag [#allocation7], 1
    %1058 = vsyncpa %s1057, 1
    %1059 = vsyncpa [#allocation5], 1
    %s1060 = scalar_lea.sflag [#allocation5], 1
    %1061 = vsyncpa %s1060, 1

</llo_original>
